<compile_context>
chip_gen: v7x
topology: tpu7x:2x2x1
jax: 0.10.0
libtpu: 0.0.40
codegen_flags: <defaults>
</compile_context>

<pallas_src>
import math
import numpy as np
import jax
import jax.numpy as jnp
from jax import lax
from jax.experimental import pallas as pl
from jax.experimental.pallas import tpu as pltpu


# ----------------------------------------------------------------------------
# Host-side constant / layout helpers
# ----------------------------------------------------------------------------

def make_resize_matrix(t_in: int, t_out: int) -> np.ndarray:
    """Linear-interpolation (align_corners=True style) resize matrix (t_in, t_out)."""
    R = np.zeros((t_in, t_out), dtype=np.float32)
    if t_out == 1:
        R[:, 0] = 1.0 / t_in
    else:
        for l in range(t_out):
            pos = l * (t_in - 1) / (t_out - 1)
            i0 = int(np.floor(pos))
            i1 = min(i0 + 1, t_in - 1)
            frac = pos - i0
            R[i0, l] += 1.0 - frac
            R[i1, l] += frac
    return R


def _im2col_taps(x_ncl, T):
    """(Bp, cin, T) NCL -> (Bp, T, 3*cin): k=3 / pad=1 taps, feature order [dk*cin+c]."""
    xl = jnp.transpose(x_ncl, (0, 2, 1)).astype(jnp.float32)        # (Bp, T, cin)
    xp = jnp.pad(xl, ((0, 0), (1, 1), (0, 0)))                      # (Bp, T+2, cin)
    return jnp.concatenate([xp[:, dk:dk + T, :] for dk in range(3)], axis=-1)


def build_fused_input(accel, audio, nb, bb, T, kin):
    """Fuse both modalities' taps + a constant-1 bias row into (nb, kin, bb*T)."""
    Bp = accel.shape[0]
    ta = _im2col_taps(accel, T)                                     # (Bp, T, 9)
    tu = _im2col_taps(audio, T)                                     # (Bp, T, 30)
    ones = jnp.ones((Bp, T, 1), jnp.float32)                        # bias row
    x = jnp.concatenate([ta, tu, ones], axis=-1)                    # (Bp, T, 40)
    pad = kin - x.shape[-1]
    if pad:
        x = jnp.pad(x, ((0, 0), (0, 0), (0, pad)))
    x = x.reshape(nb, bb, T, kin)
    return jnp.transpose(x, (0, 3, 1, 2)).reshape(nb, kin, bb * T)  # lanes = b*T + t


def pack_fused_weights(params, C, cin_a, cin_u, kin):
    """Block-diagonal fused weights for both modalities.

    Returns:
      w1f   (H1, kin)    conv1 (b1 folded via the constant input row; row 2C
                          regenerates the constant so conv2 can pick up b2)
      w2f   (3*2C, H1)   conv2, three taps stacked (b2 folded into center tap)
      whead (2C, 1)      0.5 * [aw3; uw3]   (modality mean folded in)
      bhead scalar       0.5 * (ab3 + ub3)
    """
    ka, ku = 3 * cin_a, 3 * cin_u
    C2 = 2 * C
    H1 = ((C2 + 1 + 7) // 8) * 8
    bias_row = ka + ku

    aw1 = np.asarray(params['aw1']); uw1 = np.asarray(params['uw1'])
    aw2 = np.asarray(params['aw2']); uw2 = np.asarray(params['uw2'])

    w1f = np.zeros((H1, kin), np.float32)
    w1f[0:C, 0:ka] = aw1.T
    w1f[C:C2, ka:ka + ku] = uw1.T
    w1f[0:C, bias_row] = np.asarray(params['ab1']).reshape(C)
    w1f[C:C2, bias_row] = np.asarray(params['ub1']).reshape(C)
    w1f[C2, bias_row] = 1.0            # h1[2C] == ReLU(1) == 1 -> carries b2

    w2f = np.zeros((3 * C2, H1), np.float32)
    for dk in range(3):
        w2f[dk * C2:dk * C2 + C, 0:C] = aw2[dk * C:(dk + 1) * C].T
        w2f[dk * C2 + C:dk * C2 + C2, C:C2] = uw2[dk * C:(dk + 1) * C].T
    # biases go into the center tap (dk=1), against the constant-1 h1 row.
    w2f[C2:C2 + C, C2] = np.asarray(params['ab2']).reshape(C)
    w2f[C2 + C:2 * C2, C2] = np.asarray(params['ub2']).reshape(C)

    whead = 0.5 * np.concatenate([np.asarray(params['aw3']).reshape(C),
                                  np.asarray(params['uw3']).reshape(C)])[:, None]
    bhead = 0.5 * float(np.asarray(params['ab3']).reshape(()) +
                        np.asarray(params['ub3']).reshape(()))
    return (jnp.asarray(w1f), jnp.asarray(w2f),
            jnp.asarray(whead.astype(np.float32)), bhead)


# ----------------------------------------------------------------------------
# Pallas kernel
# ----------------------------------------------------------------------------

def build_fused_forward(nb, bbt, T, kin, H1, C2, dtype=jnp.float32):
    """Returns a pallas_call computing the fused per-time head row (nb, 1, bbt)."""

    def kernel(x_ref, w1_ref, w2_ref, wh_ref, o_ref):
        x = x_ref[...]                                               # (kin, bbt)

        # conv1 (both modalities + bias), one aligned MXU matmul.
        h1 = jnp.maximum(
            jnp.dot(w1_ref[...], x, preferred_element_type=jnp.float32), 0.0)  # (H1, bbt)

        # conv2: stacked 3-tap matmul, then +/-1 time shifts via XLU roll with
        # a boundary mask (zero padding at per-element time boundaries).
        p = jnp.dot(w2_ref[...], h1, preferred_element_type=jnp.float32)       # (3*C2, bbt)

        t_idx = lax.broadcasted_iota(jnp.int32, (C2, bbt), 1) % T
        prev = pltpu.roll(p[0:C2, :], 1, axis=1)            # lane i <- lane i-1
        nxt = pltpu.roll(p[2 * C2:3 * C2, :], bbt - 1, axis=1)  # lane i <- lane i+1
        acc = (jnp.where(t_idx != 0, prev, 0.0)
               + p[C2:2 * C2, :]
               + jnp.where(t_idx != T - 1, nxt, 0.0))
        h2 = jnp.maximum(acc, 0.0)                                   # (C2, bbt)

        # Fused 1x1 heads + modality mean: VPU multiply + sublane reduce
        # (keeps the MXU free), lane-dense (1, bbt) output row.
        u = jnp.sum(h2 * wh_ref[...], axis=0, keepdims=True)         # (1, bbt)
        o_ref[...] = u.astype(o_ref.dtype)

    grid_spec = pltpu.PrefetchScalarGridSpec(
        num_scalar_prefetch=0,
        grid=(nb,),
        in_specs=[
            pl.BlockSpec((None, kin, bbt), lambda i: (i, 0, 0)),   # fused im2col input
            pl.BlockSpec((H1, kin), lambda i: (0, 0)),             # conv1 weights
            pl.BlockSpec((3 * C2, H1), lambda i: (0, 0)),          # conv2 stacked taps
            pl.BlockSpec((C2, 1), lambda i: (0, 0)),               # fused head vector
        ],
        out_specs=pl.BlockSpec((None, 1, bbt), lambda i: (i, 0, 0)),
    )
    return pl.pallas_call(
        kernel,
        out_shape=jax.ShapeDtypeStruct((nb, 1, bbt), dtype),
        grid_spec=grid_spec,
        compiler_params=pltpu.CompilerParams(
            dimension_semantics=("parallel",)),
    )


# ----------------------------------------------------------------------------
# Parameters / wrappers
# ----------------------------------------------------------------------------

def init_params(key, C, CIN_A, CIN_U):
    """Deterministic synthetic parameters (kernel-friendly layouts)."""
    ks = jax.random.split(key, 12)
    s = 0.1

    def nrm(k, shape):
        return s * jax.random.normal(k, shape, dtype=jnp.float32)

    return dict(
        # accel branch
        aw1=nrm(ks[0], (3 * CIN_A, C)), ab1=nrm(ks[1], (1, C)),
        aw2=nrm(ks[2], (3 * C, C)),     ab2=nrm(ks[3], (1, C)),
        aw3=nrm(ks[4], (C, 1)),         ab3=nrm(ks[5], (1, 1)),
        # audio branch
        uw1=nrm(ks[6], (3 * CIN_U, C)), ub1=nrm(ks[7], (1, C)),
        uw2=nrm(ks[8], (3 * C, C)),     ub2=nrm(ks[9], (1, C)),
        uw3=nrm(ks[10], (C, 1)),        ub3=nrm(ks[11], (1, 1)),
    )


def segmentation_fusion_forward(params, batch, mask_len, C):
    """Pallas-backed forward.  batch: {'accel': (B,3,T), 'audio': (B,10,T)}."""
    accel, audio = batch['accel'], batch['audio']
    B, cin_a, T = accel.shape
    cin_u = audio.shape[1]
    L = mask_len

    # Lane-dense batch block: bb*T is a multiple of 128; nb >= 2 so the
    # "parallel" grid axis shards across both v7x TensorCores.
    bb = 128 // math.gcd(T, 128)
    assert (bb * T) % 128 == 0
    nb = max(2, -(-B // bb))
    Bp = nb * bb
    if Bp != B:
        accel = jnp.pad(accel, ((0, Bp - B), (0, 0), (0, 0)))
        audio = jnp.pad(audio, ((0, Bp - B), (0, 0), (0, 0)))

    kin = ((3 * cin_a + 3 * cin_u + 1 + 7) // 8) * 8       # 40 (no padding to C)
    C2 = 2 * C
    H1 = ((C2 + 1 + 7) // 8) * 8

    x = build_fused_input(accel, audio, nb, bb, T, kin)     # (nb, kin, bb*T)
    w1f, w2f, whead, bhead = pack_fused_weights(params, C, cin_a, cin_u, kin)

    fwd = build_fused_forward(nb, bb * T, T, kin, H1, C2)
    u = fwd(x, w1f, w2f, whead)                             # (nb, 1, bb*T)

    # Tiny shared resize (B,T)@(T,L) + head bias, kept as a plain XLA einsum
    # in the wrapper (per review: no bb-times-redundant block-diag constant).
    u = u.reshape(Bp, T)[:B] + bhead                        # (B, T)
    R = jnp.asarray(make_resize_matrix(T, L))               # (T, L)
    masks = u @ R                                           # (B, L)
    return masks[:, None, :]                                # (B, 1, mask_len)


def reference_forward(params, batch, mask_len, C):
    """Pure-JAX reference with identical math (for correctness check)."""
    def modality(x_ncl, w1, b1, w2, b2, w3, b3):
        B, cin, T = x_ncl.shape
        R = jnp.asarray(make_resize_matrix(T, mask_len))
        xl = jnp.transpose(x_ncl, (0, 2, 1)).astype(jnp.float32)
        xp = jnp.pad(xl, ((0, 0), (1, 1), (0, 0)))
        h1 = sum(xp[:, dk:dk + T, :] @ w1[dk * cin:(dk + 1) * cin]
                 for dk in range(3)) + b1
        h1 = jnp.maximum(h1, 0.0)
        hp = jnp.pad(h1, ((0, 0), (1, 1), (0, 0)))
        h2 = sum(hp[:, dk:dk + T, :] @ w2[dk * C:(dk + 1) * C]
                 for dk in range(3)) + b2
        h2 = jnp.maximum(h2, 0.0)
        u = h2 @ w3 + b3                                    # (B, T, 1)
        return jnp.einsum('bti,tl->bli', u, R)              # (B, L, 1)

    m_a = modality(batch['accel'], params['aw1'], params['ab1'],
                   params['aw2'], params['ab2'], params['aw3'], params['ab3'])
    m_u = modality(batch['audio'], params['uw1'], params['ub1'],
                   params['uw2'], params['ub2'], params['uw3'], params['ub3'])
    masks = jnp.stack([m_a, m_u], axis=2).mean(axis=2)      # (B, L, 1)
    return jnp.transpose(masks, (0, 2, 1))                  # (B, 1, L)


if __name__ == "__main__":
    B, T, MASK_LEN, HIDDEN = 2, 16, 32, 32
    CIN_ACCEL, CIN_AUDIO = 3, 10

    key = jax.random.PRNGKey(0)
    kp, ka, ku = jax.random.split(key, 3)
    params = init_params(kp, HIDDEN, CIN_ACCEL, CIN_AUDIO)
    batch = {
        'accel': jax.random.normal(ka, (B, CIN_ACCEL, T), dtype=jnp.float32),
        'audio': jax.random.normal(ku, (B, CIN_AUDIO, T), dtype=jnp.float32),
    }

    out = segmentation_fusion_forward(params, batch, MASK_LEN, HIDDEN)
    out = jax.block_until_ready(out)

    ref = reference_forward(params, batch, MASK_LEN, HIDDEN)
    assert out.shape == (B, 1, MASK_LEN), out.shape
    np.testing.assert_allclose(np.asarray(out), np.asarray(ref),
                               rtol=1e-4, atol=1e-4)
    print("KERNEL_OK")
</pallas_src>

<mosaic_0001>
module attributes {stable_mosaic.version = 11 : i64} {
  func.func @kernel(%arg0: i32, %arg1: memref<1x40x128xf32, #tpu.memory_space<vmem>>, %arg2: memref<72x40xf32, #tpu.memory_space<vmem>>, %arg3: memref<192x72xf32, #tpu.memory_space<vmem>>, %arg4: memref<64x1xf32, #tpu.memory_space<vmem>>, %arg5: memref<1x1x128xf32, #tpu.memory_space<vmem>>) attributes {dimension_semantics = [#tpu.dimension_semantics<parallel>], iteration_bounds = array<i64: 2>, scalar_prefetch = 0 : i64, scratch_operands = 0 : i64, tpu.core_type = #tpu.core_type<tc>, window_params = [{transform_indices = @transform_0, window_bounds = array<i64: 1, 40, 128>}, {pipeline_mode = #tpu.pipeline_mode<synchronous>, transform_indices = @transform_1, window_bounds = array<i64: 72, 40>}, {pipeline_mode = #tpu.pipeline_mode<synchronous>, transform_indices = @transform_2, window_bounds = array<i64: 192, 72>}, {pipeline_mode = #tpu.pipeline_mode<synchronous>, transform_indices = @transform_3, window_bounds = array<i64: 64, 1>}, {transform_indices = @transform_4, window_bounds = array<i64: 1, 1, 128>}]} {
    %c0 = arith.constant 0 : index
    %c0_0 = arith.constant 0 : index
    %c0_1 = arith.constant 0 : index
    %0 = vector.load %arg1[%c0, %c0_0, %c0_1] : memref<1x40x128xf32, #tpu.memory_space<vmem>>, vector<1x40x128xf32>
    %1 = vector.shape_cast %0 : vector<1x40x128xf32> to vector<40x128xf32>
    %c0_2 = arith.constant 0 : index
    %c0_3 = arith.constant 0 : index
    %2 = vector.load %arg2[%c0_2, %c0_3] : memref<72x40xf32, #tpu.memory_space<vmem>>, vector<72x40xf32>
    %cst = arith.constant dense<0.000000e+00> : vector<72x128xf32>
    %3 = tpu.matmul %2, %1, %cst {dimension_numbers = #tpu.dot_dimension_numbers<[1], [0], [0], [1], [0, 0, 1, 1], [], []>} : vector<72x40xf32>, vector<40x128xf32>, vector<72x128xf32> -> vector<72x128xf32>
    %cst_4 = arith.constant 0.000000e+00 : f32
    %4 = vector.broadcast %cst_4 : f32 to vector<72x128xf32>
    %5 = arith.maximumf %3, %4 : vector<72x128xf32>
    %c0_5 = arith.constant 0 : index
    %c0_6 = arith.constant 0 : index
    %6 = vector.load %arg3[%c0_5, %c0_6] : memref<192x72xf32, #tpu.memory_space<vmem>>, vector<192x72xf32>
    %cst_7 = arith.constant dense<0.000000e+00> : vector<192x128xf32>
    %7 = tpu.matmul %6, %5, %cst_7 {dimension_numbers = #tpu.dot_dimension_numbers<[1], [0], [0], [1], [0, 0, 1, 1], [], []>} : vector<192x72xf32>, vector<72x128xf32>, vector<192x128xf32> -> vector<192x128xf32>
    %8 = tpu.iota {dimensions = array<i32: 1>} : vector<64x128xi32>
    %c16_i32 = arith.constant 16 : i32
    %c0_i32 = arith.constant 0 : i32
    %9 = arith.cmpi eq, %c16_i32, %c0_i32 : i32
    %c1_i32 = arith.constant 1 : i32
    %10 = arith.select %9, %c1_i32, %c16_i32 : i32
    %11 = vector.broadcast %10 : i32 to vector<64x128xi32>
    %12 = arith.remsi %8, %11 : vector<64x128xi32>
    %c0_i32_8 = arith.constant 0 : i32
    %13 = vector.broadcast %c0_i32_8 : i32 to vector<64x128xi32>
    %14 = arith.cmpi ne, %12, %13 : vector<64x128xi32>
    %c0_i32_9 = arith.constant 0 : i32
    %15 = vector.broadcast %c0_i32_9 : i32 to vector<64x128xi32>
    %16 = arith.cmpi slt, %12, %15 : vector<64x128xi32>
    %c0_i32_10 = arith.constant 0 : i32
    %17 = arith.cmpi slt, %10, %c0_i32_10 : i32
    %18 = vector.broadcast %17 : i1 to vector<64x128xi1>
    %19 = vector.broadcast %18 : vector<64x128xi1> to vector<64x128xi1>
    %20 = arith.xori %16, %19 : vector<64x128xi1>
    %21 = arith.andi %20, %14 : vector<64x128xi1>
    %22 = vector.broadcast %10 : i32 to vector<64x128xi32>
    %23 = arith.addi %12, %22 : vector<64x128xi32>
    %24 = arith.select %21, %23, %12 : vector<64x128xi1>, vector<64x128xi32>
    %25 = vector.extract_strided_slice %7 {offsets = [0, 0], sizes = [64, 128], strides = [1, 1]} : vector<192x128xf32> to vector<64x128xf32>
    %c1_i32_11 = arith.constant 1 : i32
    %26 = tpu.dynamic_rotate %25 by %c1_i32_11 dim 1 : vector<64x128xf32>, i32 -> vector<64x128xf32>
    %27 = vector.extract_strided_slice %7 {offsets = [128, 0], sizes = [64, 128], strides = [1, 1]} : vector<192x128xf32> to vector<64x128xf32>
    %c127_i32 = arith.constant 127 : i32
    %28 = tpu.dynamic_rotate %27 by %c127_i32 dim 1 : vector<64x128xf32>, i32 -> vector<64x128xf32>
    %c0_i32_12 = arith.constant 0 : i32
    %29 = vector.broadcast %c0_i32_12 : i32 to vector<64x128xi32>
    %30 = arith.cmpi ne, %24, %29 : vector<64x128xi32>
    %cst_13 = arith.constant 0.000000e+00 : f32
    %31 = vector.broadcast %cst_13 : f32 to vector<64x128xf32>
    %32 = arith.select %30, %26, %31 : vector<64x128xi1>, vector<64x128xf32>
    %33 = vector.extract_strided_slice %7 {offsets = [64, 0], sizes = [64, 128], strides = [1, 1]} : vector<192x128xf32> to vector<64x128xf32>
    %34 = arith.addf %32, %33 : vector<64x128xf32>
    %c15_i32 = arith.constant 15 : i32
    %35 = vector.broadcast %c15_i32 : i32 to vector<64x128xi32>
    %36 = arith.cmpi ne, %24, %35 : vector<64x128xi32>
    %cst_14 = arith.constant 0.000000e+00 : f32
    %37 = vector.broadcast %cst_14 : f32 to vector<64x128xf32>
    %38 = arith.select %36, %28, %37 : vector<64x128xi1>, vector<64x128xf32>
    %39 = arith.addf %34, %38 : vector<64x128xf32>
    %cst_15 = arith.constant 0.000000e+00 : f32
    %40 = vector.broadcast %cst_15 : f32 to vector<64x128xf32>
    %41 = arith.maximumf %39, %40 : vector<64x128xf32>
    %c0_16 = arith.constant 0 : index
    %c0_17 = arith.constant 0 : index
    %42 = vector.load %arg4[%c0_16, %c0_17] : memref<64x1xf32, #tpu.memory_space<vmem>>, vector<64x1xf32>
    %43 = vector.broadcast %42 : vector<64x1xf32> to vector<64x128xf32>
    %44 = arith.mulf %41, %43 : vector<64x128xf32>
    %cst_18 = arith.constant dense<0.000000e+00> : vector<128xf32>
    %45 = vector.multi_reduction <add>, %44, %cst_18 [0] : vector<64x128xf32> to vector<128xf32>
    %46 = vector.shape_cast %45 : vector<128xf32> to vector<1x128xf32>
    %c0_19 = arith.constant 0 : index
    %c0_20 = arith.constant 0 : index
    %c0_21 = arith.constant 0 : index
    %47 = vector.load %arg5[%c0_19, %c0_20, %c0_21] : memref<1x1x128xf32, #tpu.memory_space<vmem>>, vector<1x1x128xf32>
    %48 = vector.shape_cast %47 : vector<1x1x128xf32> to vector<1x128xf32>
    %49 = vector.shape_cast %46 : vector<1x128xf32> to vector<1x1x128xf32>
    tpu.vector_store %arg5[%c0_19, %c0_20, %c0_21], %49 {strides = array<i32>} : memref<1x1x128xf32, #tpu.memory_space<vmem>>, vector<1x1x128xf32>,
    return
  }
  func.func @transform_0(%arg0: i32) -> (i32, i32, i32) {
    %c0_i32 = arith.constant 0 : i32
    %c0_i32_0 = arith.constant 0 : i32
    %c0_i32_1 = arith.constant 0 : i32
    return %arg0, %c0_i32, %c0_i32_0 : i32, i32, i32
  }
  func.func @transform_1(%arg0: i32) -> (i32, i32) {
    %c0_i32 = arith.constant 0 : i32
    %c0_i32_0 = arith.constant 0 : i32
    %c0_i32_1 = arith.constant 0 : i32
    return %c0_i32, %c0_i32_0 : i32, i32
  }
  func.func @transform_2(%arg0: i32) -> (i32, i32) {
    %c0_i32 = arith.constant 0 : i32
    %c0_i32_0 = arith.constant 0 : i32
    %c0_i32_1 = arith.constant 0 : i32
    return %c0_i32, %c0_i32_0 : i32, i32
  }
  func.func @transform_3(%arg0: i32) -> (i32, i32) {
    %c0_i32 = arith.constant 0 : i32
    %c0_i32_0 = arith.constant 0 : i32
    %c0_i32_1 = arith.constant 0 : i32
    return %c0_i32, %c0_i32_0 : i32, i32
  }
  func.func @transform_4(%arg0: i32) -> (i32, i32, i32) {
    %c0_i32 = arith.constant 0 : i32
    %c0_i32_0 = arith.constant 0 : i32
    %c0_i32_1 = arith.constant 0 : i32
    return %arg0, %c0_i32, %c0_i32_0 : i32, i32, i32
  }
}

</mosaic_0001>

<llo_original>
// kernel: tpu_custom_call.1
$region0: #{tpu_custom_call.1}
  #allocation0 [shape = 'u32[]', space=smem, size = 0x4, offset = 0x4, fixed_abs, tag = 'smem constant byte address 0x4 - core index']
  #allocation1 [shape = 'u32[144,128]{1,0:T(1,128)}', space=vmem, size = 0x12000, scoped, tag = 'internal scratch']
  %s0 = inlined_call_operand.vmem [shape: f32[2,40,128], index: 0, kind: input, shape index: {}]
  %s1 = inlined_call_operand.vmem [shape: f32[72,40], index: 1, kind: input, shape index: {}]
  %s2 = inlined_call_operand.vmem [shape: f32[192,72], index: 2, kind: input, shape index: {}]
  %s3 = inlined_call_operand.vmem [shape: f32[64,1], index: 3, kind: input, shape index: {}]
  %s4 = inlined_call_operand.hbm [shape: f32[2,1,128], index: 4, kind: output, shape index: {}]
  %s5 = sld [smem:[#allocation0]]
  $region49: #{tpu_custom_call.1} parent=0
    _
  %s7 = ssub.s32 1, %s5
  %s8 = scalar_select 0, %s7, %s5
  $region1: #{tpu_custom_call.1} parent=0
    #allocation2 [shape = 'u8[1024]{0}', space=vmem, size = 0x400, scoped, tag = 'output window, operand 0']
    #allocation3 [shape = 's32[2]{0}', space=sflag, size = 0x8, scoped, tag = 'scoped memory for tpu_custom_call.1']
    %9 = vsyncpa [#allocation3], 0
    %s10 = scalar_lea.sflag [#allocation3], 1
    %11 = vsyncpa %s10, 0
    loop: start=0, step=1, limit=4
    $region2: #{tpu_custom_call.1} parent=1 // loop_pre_header
      _
    $region3: #{tpu_custom_call.1} parent=1 // loop_header
      %s13 = sphi 0, %s17
      %p14 = scmp.ge.s32.totalorder %s13, 4
      %s23 = sphi 0, %s25
      %s26 = sphi 0, %s23
      %s27 = sphi 0, %s26
      %s43 = sphi 0, %s27
      %s47 = sphi 0, %s47
      %s49 = sphi 0, %s47
      %s50 = sphi 0, %s49
      %s64 = sphi 0, %s50
      %s68 = sphi 0, %s68
      %s70 = sphi 0, %s68
      %s71 = sphi 0, %s70
      %s85 = sphi 0, %s71
      %s89 = sphi 0, %s89
      %s91 = sphi 0, %s89
      %s92 = sphi 0, %s91
      %s106 = sphi 0, %s92
      %s112 = sphi 0, %s114
      %s115 = sphi 0, %s112
      %s116 = sphi 0, %s115
      %s132 = sphi 0, %s116
    $region4: #{tpu_custom_call.1} parent=1 // loop_header_branch
      %16 = sbr.rel (%p14) target = $region8
    $region5: #{tpu_custom_call.1} parent=1 // loop_body
      %s18 = ssub.s32 %s13, 1
      %s19 = ssub.s32 %s13, 2
      %s20 = sadd.s32 %s13, 1
      %s21 = ssub.s32 %s13, %s20
      %p22 = scmp.eq.s32.totalorder %s21, 0
      %s24 = sadd.s32 %s23, 1
      %s25 = scalar_select %p22, %s23, %s24
      %p28 = pneg %p22
      %p29 = scmp.eq.s32.totalorder %s13, 1
      %p30 = por %p28, %p29
      %p31 = scmp.ne.s32.totalorder %s23, %s26
      %p32 = scmp.eq.s32.totalorder %s13, 0
      %p33 = por %p31, %p32
      %p34 = scmp.ne.s32.totalorder %s23, %s26
      %p35 = scmp.eq.s32.totalorder %s18, 1
      %p36 = por %p34, %p35
      %p37 = scmp.ne.s32.totalorder %s26, %s27
      %p38 = scmp.eq.s32.totalorder %s18, 0
      %p39 = por %p37, %p38
      %p40 = scmp.ne.s32.totalorder %s26, %s27
      %p41 = scmp.eq.s32.totalorder %s19, 1
      %p42 = por %p40, %p41
      %p44 = scmp.ne.s32.totalorder %s27, %s43
      %p45 = scmp.eq.s32.totalorder %s19, 0
      %p46 = por %p44, %p45
      %s48 = sadd.s32 %s47, 1
      %p51 = scmp.eq.s32.totalorder %s13, 1
      %p52 = scmp.ne.s32.totalorder %s47, %s49
      %p53 = scmp.eq.s32.totalorder %s13, 0
      %p54 = por %p52, %p53
      %p55 = scmp.ne.s32.totalorder %s47, %s49
      %p56 = scmp.eq.s32.totalorder %s18, 1
      %p57 = por %p55, %p56
      %p58 = scmp.ne.s32.totalorder %s49, %s50
      %p59 = scmp.eq.s32.totalorder %s18, 0
      %p60 = por %p58, %p59
      %p61 = scmp.ne.s32.totalorder %s49, %s50
      %p62 = scmp.eq.s32.totalorder %s19, 1
      %p63 = por %p61, %p62
      %p65 = scmp.ne.s32.totalorder %s50, %s64
      %p66 = scmp.eq.s32.totalorder %s19, 0
      %p67 = por %p65, %p66
      %s69 = sadd.s32 %s68, 1
      %p72 = scmp.eq.s32.totalorder %s13, 1
      %p73 = scmp.ne.s32.totalorder %s68, %s70
      %p74 = scmp.eq.s32.totalorder %s13, 0
      %p75 = por %p73, %p74
      %p76 = scmp.ne.s32.totalorder %s68, %s70
      %p77 = scmp.eq.s32.totalorder %s18, 1
      %p78 = por %p76, %p77
      %p79 = scmp.ne.s32.totalorder %s70, %s71
      %p80 = scmp.eq.s32.totalorder %s18, 0
      %p81 = por %p79, %p80
      %p82 = scmp.ne.s32.totalorder %s70, %s71
      %p83 = scmp.eq.s32.totalorder %s19, 1
      %p84 = por %p82, %p83
      %p86 = scmp.ne.s32.totalorder %s71, %s85
      %p87 = scmp.eq.s32.totalorder %s19, 0
      %p88 = por %p86, %p87
      %s90 = sadd.s32 %s89, 1
      %p93 = scmp.eq.s32.totalorder %s13, 1
      %p94 = scmp.ne.s32.totalorder %s89, %s91
      %p95 = scmp.eq.s32.totalorder %s13, 0
      %p96 = por %p94, %p95
      %p97 = scmp.ne.s32.totalorder %s89, %s91
      %p98 = scmp.eq.s32.totalorder %s18, 1
      %p99 = por %p97, %p98
      %p100 = scmp.ne.s32.totalorder %s91, %s92
      %p101 = scmp.eq.s32.totalorder %s18, 0
      %p102 = por %p100, %p101
      %p103 = scmp.ne.s32.totalorder %s91, %s92
      %p104 = scmp.eq.s32.totalorder %s19, 1
      %p105 = por %p103, %p104
      %p107 = scmp.ne.s32.totalorder %s92, %s106
      %p108 = scmp.eq.s32.totalorder %s19, 0
      %p109 = por %p107, %p108
      %s110 = ssub.s32 %s13, %s20
      %p111 = scmp.eq.s32.totalorder %s110, 0
      %s113 = sadd.s32 %s112, 1
      %s114 = scalar_select %p111, %s112, %s113
      %p117 = pneg %p111
      %p118 = scmp.eq.s32.totalorder %s13, 1
      %p119 = por %p117, %p118
      %p120 = scmp.ne.s32.totalorder %s112, %s115
      %p121 = scmp.eq.s32.totalorder %s13, 0
      %p122 = por %p120, %p121
      %p123 = scmp.ne.s32.totalorder %s112, %s115
      %p124 = scmp.eq.s32.totalorder %s18, 1
      %p125 = por %p123, %p124
      %p126 = scmp.ne.s32.totalorder %s115, %s116
      %p127 = scmp.eq.s32.totalorder %s18, 0
      %p128 = por %p126, %p127
      %p129 = scmp.ne.s32.totalorder %s115, %s116
      %p130 = scmp.eq.s32.totalorder %s19, 1
      %p131 = por %p129, %p130
      %p133 = scmp.ne.s32.totalorder %s116, %s132
      %p134 = scmp.eq.s32.totalorder %s19, 0
      %p135 = por %p133, %p134
      %p136 = scmp.le.s32.totalorder 1, %s13
      %p137 = scmp.lt.s32.totalorder %s13, 3
      %p138 = pnand %p136, %p137
      %p139 = pneg %p138
      // Predicated region
      $region9: #{tpu_custom_call.1} parent=5 // pred_check
        _
      $region10: #{tpu_custom_call.1} parent=5 // pred_check_branch
        %141 = sbr.rel (%p138) target = $region12
      $region11: #{tpu_custom_call.1} parent=5 // pred_region
        %s142 = ssub.s32 %s13, 1
        // Predicated region
        $region13: #{tpu_custom_call.1} parent=11 // pred_check
          %p143 = pneg %p60
        $region14: #{tpu_custom_call.1} parent=11 // pred_check_branch
          %145 = sbr.rel (%p143) target = $region16
        $region15: #{tpu_custom_call.1} parent=11 // pred_region
          _
        $region16: #{tpu_custom_call.1} parent=11 // pred_fallthru
          _
        // Predicated region
        $region17: #{tpu_custom_call.1} parent=11 // pred_check
          %p146 = pneg %p81
        $region18: #{tpu_custom_call.1} parent=11 // pred_check_branch
          %148 = sbr.rel (%p146) target = $region20
        $region19: #{tpu_custom_call.1} parent=11 // pred_region
          _
        $region20: #{tpu_custom_call.1} parent=11 // pred_fallthru
          _
        // Predicated region
        $region21: #{tpu_custom_call.1} parent=11 // pred_check
          %p149 = pneg %p102
        $region22: #{tpu_custom_call.1} parent=11 // pred_check_branch
          %151 = sbr.rel (%p149) target = $region24
        $region23: #{tpu_custom_call.1} parent=11 // pred_region
          _
        $region24: #{tpu_custom_call.1} parent=11 // pred_fallthru
          _
      $region12: #{tpu_custom_call.1} parent=5 // pred_fallthru
        _
      %p152 = scmp.lt.s32.totalorder %s13, 2
      // Predicated region
      $region25: #{tpu_custom_call.1} parent=5 // pred_check
        %p153 = pneg %p152
      $region26: #{tpu_custom_call.1} parent=5 // pred_check_branch
        %155 = sbr.rel (%p153) target = $region28
      $region27: #{tpu_custom_call.1} parent=5 // pred_region
        // Predicated region
        $region29: #{tpu_custom_call.1} parent=27 // pred_check
          %p156 = pneg %p33
        $region30: #{tpu_custom_call.1} parent=27 // pred_check_branch
          %158 = sbr.rel (%p156) target = $region32
        $region31: #{tpu_custom_call.1} parent=27 // pred_region
          %p159 = scmp.lt.s32.totalorder %s13, 1
          %s160 = scalar_select %p159, %s13, 1
          %s161 = smul.addr %s160, 5
          %s162 = smul.addr %s161, 8
          %s163 = scalar_lea.vmem %s0, %s162
        $region32: #{tpu_custom_call.1} parent=27 // pred_fallthru
          _
      $region28: #{tpu_custom_call.1} parent=5 // pred_fallthru
        _
      %p164 = scmp.le.s32.totalorder 1, %s13
      %p165 = scmp.lt.s32.totalorder %s13, 3
      %p166 = pnand %p164, %p165
      %p167 = pneg %p166
      // Predicated region
      $region33: #{tpu_custom_call.1} parent=5 // pred_check
        _
      $region34: #{tpu_custom_call.1} parent=5 // pred_check_branch
        %169 = sbr.rel (%p166) target = $region36
      $region35: #{tpu_custom_call.1} parent=5 // pred_region
        %s170 = ssub.s32 %s13, 1
        %p171 = scmp.lt.s32.totalorder %s18, 1
        %s172 = scalar_select %p171, %s18, 1
        %s173 = smul.addr %s172, 5
        %s174 = smul.addr %s173, 8
        %s175 = scalar_lea.vmem %s0, %s174
        %p176 = pneg %p39
        %p177 = pneg %p36
        %p178 = pneg %p60
        %p179 = pneg %p57
        %p180 = pneg %p81
        %p181 = pneg %p78
        %p182 = pneg %p102
        %p183 = pneg %p99
        %p184 = pneg %p128
        %p185 = pneg %p125
        %s186 = sand.u32 %s115, 1
        %s187 = scalar_lea.sflag [#allocation3], %s186
        %s188 = sand.u32 %s115, 1
        %s189 = scalar_lea.vmem [#allocation2], %s188
        %p190 = scmp.lt.s32.totalorder %s18, 1
        %s191 = scalar_select %p190, %s18, 1
        %s192 = smul.addr %s191, 5
        %s193 = smul.addr %s192, 8
        %s194 = scalar_lea.vmem %s0, %s193
        %v195 = vld [vmem:[%s194] sm:$0xff]
        %v196 = vld [vmem:[%s194 + $0x8] sm:$0xff]
        %v197 = vld [vmem:[%s194 + $0x10] sm:$0xff]
        %v198 = vld [vmem:[%s194 + $0x18] sm:$0xff]
        %v199 = vld [vmem:[%s194 + $0x20] sm:$0xff]
        %v200 = vld [vmem:[%s1] sm:$0xff]
        %v201 = vld [vmem:[%s1 + $0x8] sm:$0xff]
        %v202 = vld [vmem:[%s1 + $0x10] sm:$0xff]
        %v203 = vld [vmem:[%s1 + $0x18] sm:$0xff]
        %v204 = vld [vmem:[%s1 + $0x20] sm:$0xff]
        %v205 = vld [vmem:[%s1 + $0x28] sm:$0xff]
        %v206 = vld [vmem:[%s1 + $0x30] sm:$0xff]
        %v207 = vld [vmem:[%s1 + $0x38] sm:$0xff]
        %v208 = vld [vmem:[%s1 + $0x40] sm:$0xff]
        %vm209 = vcmask 326656
        %v211 = vsel %vm209, %v200, 0
        %v214 = vsel %vm209, %v201, 0
        %v217 = vsel %vm209, %v202, 0
        %v220 = vsel %vm209, %v203, 0
        %v223 = vsel %vm209, %v204, 0
        %v226 = vsel %vm209, %v205, 0
        %v229 = vsel %vm209, %v206, 0
        %v232 = vsel %vm209, %v207, 0
        %v235 = vsel %vm209, %v208, 0
        %237 = vmatprep.subr.mxu0 0.0
        %238 = vmatpush1.msra.mxu0 %v195
        %239 = vmatprep.subr.mxu0 0.0
        %240 = vmatpush1.msra.mxu0 %v196
        %241 = vmatprep.subr.mxu0 0.0
        %242 = vmatpush1.msra.mxu0 %v197
        %243 = vmatprep.subr.mxu0 0.0
        %244 = vmatpush1.msra.mxu0 %v198
        %245 = vmatprep.subr.mxu0 0.0
        %246 = vmatpush1.msra.mxu0 %v199
        %247 = vmatprep.subr.mxu0 0.0
        %248 = vmatpush1.msra.mxu0 0.0
        %249 = vmatprep.subr.mxu0 0.0
        %250 = vmatpush1.msra.mxu0 0.0
        %251 = vmatprep.subr.mxu0 0.0
        %252 = vmatpush1.msra.mxu0 0.0
        %253 = vmatprep.subr.mxu0 0.0
        %254 = vmatpush1.msra.mxu0 0.0
        %255 = vmatprep.subr.mxu0 0.0
        %256 = vmatpush1.msra.mxu0 0.0
        %257 = vmatprep.subr.mxu0 0.0
        %258 = vmatpush1.msra.mxu0 0.0
        %259 = vmatprep.subr.mxu0 0.0
        %260 = vmatpush1.msra.mxu0 0.0
        %261 = vmatprep.subr.mxu0 0.0
        %262 = vmatpush1.msra.mxu0 0.0
        %263 = vmatprep.subr.mxu0 0.0
        %264 = vmatpush1.msra.mxu0 0.0
        %265 = vmatprep.subr.mxu0 0.0
        %266 = vmatpush1.msra.mxu0 0.0
        %267 = vmatprep.subr.mxu0 0.0
        %268 = vmatpush1.msra.mxu0 0.0
        %269 = vmatprep.subr.mxu0 0.0
        %270 = vmatpush1.msra.mxu0 0.0
        %271 = vmatprep.subr.mxu0 0.0
        %272 = vmatpush1.msra.mxu0 0.0
        %273 = vmatprep.subr.mxu0 0.0
        %274 = vmatpush1.msra.mxu0 0.0
        %275 = vmatprep.subr.mxu0 0.0
        %276 = vmatpush1.msra.mxu0 0.0
        %277 = vmatprep.subr.mxu0 0.0
        %278 = vmatpush1.msra.mxu0 0.0
        %279 = vmatprep.subr.mxu0 0.0
        %280 = vmatpush1.msra.mxu0 0.0
        %281 = vmatprep.subr.mxu0 0.0
        %282 = vmatpush1.msra.mxu0 0.0
        %283 = vmatprep.subr.mxu0 0.0
        %284 = vmatpush1.msra.mxu0 0.0
        %285 = vmatprep.subr.mxu0 0.0
        %286 = vmatpush1.msra.mxu0 0.0
        %287 = vmatprep.subr.mxu0 0.0
        %288 = vmatpush1.msra.mxu0 0.0
        %289 = vmatprep.subr.mxu0 0.0
        %290 = vmatpush1.msra.mxu0 0.0
        %291 = vmatprep.subr.mxu0 0.0
        %292 = vmatpush1.msra.mxu0 0.0
        %293 = vmatprep.subr.mxu0 0.0
        %294 = vmatpush1.msra.mxu0 0.0
        %295 = vmatprep.subr.mxu0 0.0
        %296 = vmatpush1.msra.mxu0 0.0
        %297 = vmatprep.subr.mxu0 0.0
        %298 = vmatpush1.msra.mxu0 0.0
        %299 = vmatprep.subr.mxu0 0.0
        %300 = vmatpush1.msra.mxu0 0.0
        %301 = vmatprep.mubr.f32.mxu0 0.0
        %302 = vmatmul.mubr.f32.gmra.mrb[0].mxu0 %v211
        %v303 = vpop.f32.mrb[0].mxu0
        %v304 = vadd.f32 0.0, %v303
        %v305 = vpop.f32.mrb[0].mxu0
        %306 = vmatprep.mubr.f32.mxu0 0.0
        %307 = vmatmul.mubr.f32.gmra.mrb[0].mxu0 %v214
        %v308 = vpop.f32.mrb[0].mxu0
        %v309 = vadd.f32 0.0, %v308
        %v310 = vpop.f32.mrb[0].mxu0
        %311 = vmatprep.mubr.f32.mxu0 0.0
        %312 = vmatmul.mubr.f32.gmra.mrb[0].mxu0 %v217
        %v313 = vpop.f32.mrb[0].mxu0
        %v314 = vadd.f32 0.0, %v313
        %v315 = vpop.f32.mrb[0].mxu0
        %316 = vmatprep.mubr.f32.mxu0 0.0
        %317 = vmatmul.mubr.f32.gmra.mrb[0].mxu0 %v220
        %v318 = vpop.f32.mrb[0].mxu0
        %v319 = vadd.f32 0.0, %v318
        %v320 = vpop.f32.mrb[0].mxu0
        %321 = vmatprep.mubr.f32.mxu0 0.0
        %322 = vmatmul.mubr.f32.gmra.mrb[0].mxu0 %v223
        %v323 = vpop.f32.mrb[0].mxu0
        %v324 = vadd.f32 0.0, %v323
        %v325 = vpop.f32.mrb[0].mxu0
        %326 = vmatprep.mubr.f32.mxu0 0.0
        %327 = vmatmul.mubr.f32.gmra.mrb[0].mxu0 %v226
        %v328 = vpop.f32.mrb[0].mxu0
        %v329 = vadd.f32 0.0, %v328
        %v330 = vpop.f32.mrb[0].mxu0
        %331 = vmatprep.mubr.f32.mxu0 0.0
        %332 = vmatmul.mubr.f32.gmra.mrb[0].mxu0 %v229
        %v333 = vpop.f32.mrb[0].mxu0
        %v334 = vadd.f32 0.0, %v333
        %v335 = vpop.f32.mrb[0].mxu0
        %336 = vmatprep.mubr.f32.mxu0 0.0
        %337 = vmatmul.mubr.f32.gmra.mrb[0].mxu0 %v232
        %v338 = vpop.f32.mrb[0].mxu0
        %v339 = vadd.f32 0.0, %v338
        %v340 = vpop.f32.mrb[0].mxu0
        %341 = vmatprep.mubr.f32.mxu0 0.0
        %342 = vmatmul.mubr.f32.gmra.mrb[0].mxu0 %v235
        %v343 = vpop.f32.mrb[0].mxu0
        %v344 = vadd.f32 0.0, %v343
        %v345 = vpop.f32.mrb[0].mxu0
        %346 = vdwg.mxu0
        %v347 = vmax.f32 %v304, 0.0
        %v348 = vmax.f32 %v309, 0.0
        %v349 = vmax.f32 %v314, 0.0
        %v350 = vmax.f32 %v319, 0.0
        %v351 = vmax.f32 %v324, 0.0
        %v352 = vmax.f32 %v329, 0.0
        %v353 = vmax.f32 %v334, 0.0
        %v354 = vmax.f32 %v339, 0.0
        %v355 = vmax.f32 %v344, 0.0
        %v356 = vld [vmem:[%s2] sm:$0xff]
        %v357 = vld [vmem:[%s2 + $0x8] sm:$0xff]
        %v358 = vld [vmem:[%s2 + $0x10] sm:$0xff]
        %v359 = vld [vmem:[%s2 + $0x18] sm:$0xff]
        %v360 = vld [vmem:[%s2 + $0x20] sm:$0xff]
        %v361 = vld [vmem:[%s2 + $0x28] sm:$0xff]
        %v362 = vld [vmem:[%s2 + $0x30] sm:$0xff]
        %v363 = vld [vmem:[%s2 + $0x38] sm:$0xff]
        %v364 = vld [vmem:[%s2 + $0x40] sm:$0xff]
        %v365 = vld [vmem:[%s2 + $0x48] sm:$0xff]
        %v366 = vld [vmem:[%s2 + $0x50] sm:$0xff]
        %v367 = vld [vmem:[%s2 + $0x58] sm:$0xff]
        %v368 = vld [vmem:[%s2 + $0x60] sm:$0xff]
        %v369 = vld [vmem:[%s2 + $0x68] sm:$0xff]
        %v370 = vld [vmem:[%s2 + $0x70] sm:$0xff]
        %v371 = vld [vmem:[%s2 + $0x78] sm:$0xff]
        %v372 = vld [vmem:[%s2 + $0x80] sm:$0xff]
        %v373 = vld [vmem:[%s2 + $0x88] sm:$0xff]
        %v374 = vld [vmem:[%s2 + $0x90] sm:$0xff]
        %v375 = vld [vmem:[%s2 + $0x98] sm:$0xff]
        %v376 = vld [vmem:[%s2 + $0xa0] sm:$0xff]
        %v377 = vld [vmem:[%s2 + $0xa8] sm:$0xff]
        %v378 = vld [vmem:[%s2 + $0xb0] sm:$0xff]
        %v379 = vld [vmem:[%s2 + $0xb8] sm:$0xff]
        %vm380 = vcmask 588800
        %v382 = vsel %vm380, %v356, 0
        %v385 = vsel %vm380, %v357, 0
        %v388 = vsel %vm380, %v358, 0
        %v391 = vsel %vm380, %v359, 0
        %v394 = vsel %vm380, %v360, 0
        %v397 = vsel %vm380, %v361, 0
        %v400 = vsel %vm380, %v362, 0
        %v403 = vsel %vm380, %v363, 0
        %v406 = vsel %vm380, %v364, 0
        %v409 = vsel %vm380, %v365, 0
        %v412 = vsel %vm380, %v366, 0
        %v415 = vsel %vm380, %v367, 0
        %v418 = vsel %vm380, %v368, 0
        %v421 = vsel %vm380, %v369, 0
        %v424 = vsel %vm380, %v370, 0
        %v427 = vsel %vm380, %v371, 0
        %v430 = vsel %vm380, %v372, 0
        %v433 = vsel %vm380, %v373, 0
        %v436 = vsel %vm380, %v374, 0
        %v439 = vsel %vm380, %v375, 0
        %v442 = vsel %vm380, %v376, 0
        %v445 = vsel %vm380, %v377, 0
        %v448 = vsel %vm380, %v378, 0
        %v451 = vsel %vm380, %v379, 0
        %453 = vmatprep.subr.mxu0 0.0
        %454 = vmatpush1.msra.mxu0 %v347
        %455 = vmatprep.subr.mxu0 0.0
        %456 = vmatpush1.msra.mxu0 %v348
        %457 = vmatprep.subr.mxu0 0.0
        %458 = vmatpush1.msra.mxu0 %v349
        %459 = vmatprep.subr.mxu0 0.0
        %460 = vmatpush1.msra.mxu0 %v350
        %461 = vmatprep.subr.mxu0 0.0
        %462 = vmatpush1.msra.mxu0 %v351
        %463 = vmatprep.subr.mxu0 0.0
        %464 = vmatpush1.msra.mxu0 %v352
        %465 = vmatprep.subr.mxu0 0.0
        %466 = vmatpush1.msra.mxu0 %v353
        %467 = vmatprep.subr.mxu0 0.0
        %468 = vmatpush1.msra.mxu0 %v354
        %469 = vmatprep.subr.mxu0 0.0
        %470 = vmatpush1.msra.mxu0 %v355
        %471 = vmatprep.subr.mxu0 0.0
        %472 = vmatpush1.msra.mxu0 0.0
        %473 = vmatprep.subr.mxu0 0.0
        %474 = vmatpush1.msra.mxu0 0.0
        %475 = vmatprep.subr.mxu0 0.0
        %476 = vmatpush1.msra.mxu0 0.0
        %477 = vmatprep.subr.mxu0 0.0
        %478 = vmatpush1.msra.mxu0 0.0
        %479 = vmatprep.subr.mxu0 0.0
        %480 = vmatpush1.msra.mxu0 0.0
        %481 = vmatprep.subr.mxu0 0.0
        %482 = vmatpush1.msra.mxu0 0.0
        %483 = vmatprep.subr.mxu0 0.0
        %484 = vmatpush1.msra.mxu0 0.0
        %485 = vmatprep.subr.mxu0 0.0
        %486 = vmatpush1.msra.mxu0 0.0
        %487 = vmatprep.subr.mxu0 0.0
        %488 = vmatpush1.msra.mxu0 0.0
        %489 = vmatprep.subr.mxu0 0.0
        %490 = vmatpush1.msra.mxu0 0.0
        %491 = vmatprep.subr.mxu0 0.0
        %492 = vmatpush1.msra.mxu0 0.0
        %493 = vmatprep.subr.mxu0 0.0
        %494 = vmatpush1.msra.mxu0 0.0
        %495 = vmatprep.subr.mxu0 0.0
        %496 = vmatpush1.msra.mxu0 0.0
        %497 = vmatprep.subr.mxu0 0.0
        %498 = vmatpush1.msra.mxu0 0.0
        %499 = vmatprep.subr.mxu0 0.0
        %500 = vmatpush1.msra.mxu0 0.0
        %501 = vmatprep.subr.mxu0 0.0
        %502 = vmatpush1.msra.mxu0 0.0
        %503 = vmatprep.subr.mxu0 0.0
        %504 = vmatpush1.msra.mxu0 0.0
        %505 = vmatprep.subr.mxu0 0.0
        %506 = vmatpush1.msra.mxu0 0.0
        %507 = vmatprep.subr.mxu0 0.0
        %508 = vmatpush1.msra.mxu0 0.0
        %509 = vmatprep.subr.mxu0 0.0
        %510 = vmatpush1.msra.mxu0 0.0
        %511 = vmatprep.subr.mxu0 0.0
        %512 = vmatpush1.msra.mxu0 0.0
        %513 = vmatprep.subr.mxu0 0.0
        %514 = vmatpush1.msra.mxu0 0.0
        %515 = vmatprep.subr.mxu0 0.0
        %516 = vmatpush1.msra.mxu0 0.0
        %517 = vmatprep.mubr.f32.mxu0 0.0
        %518 = vmatmul.mubr.f32.gmra.mrb[0].mxu0 %v382
        %v519 = vpop.f32.mrb[0].mxu0
        %v520 = vadd.f32 0.0, %v519
        %v521 = vpop.f32.mrb[0].mxu0
        %522 = vmatprep.mubr.f32.mxu0 0.0
        %523 = vmatmul.mubr.f32.gmra.mrb[0].mxu0 %v385
        %v524 = vpop.f32.mrb[0].mxu0
        %v525 = vadd.f32 0.0, %v524
        %v526 = vpop.f32.mrb[0].mxu0
        %527 = vmatprep.mubr.f32.mxu0 0.0
        %528 = vmatmul.mubr.f32.gmra.mrb[0].mxu0 %v388
        %v529 = vpop.f32.mrb[0].mxu0
        %v530 = vadd.f32 0.0, %v529
        %v531 = vpop.f32.mrb[0].mxu0
        %532 = vmatprep.mubr.f32.mxu0 0.0
        %533 = vmatmul.mubr.f32.gmra.mrb[0].mxu0 %v391
        %v534 = vpop.f32.mrb[0].mxu0
        %v535 = vadd.f32 0.0, %v534
        %v536 = vpop.f32.mrb[0].mxu0
        %537 = vmatprep.mubr.f32.mxu0 0.0
        %538 = vmatmul.mubr.f32.gmra.mrb[0].mxu0 %v394
        %v539 = vpop.f32.mrb[0].mxu0
        %v540 = vadd.f32 0.0, %v539
        %v541 = vpop.f32.mrb[0].mxu0
        %542 = vmatprep.mubr.f32.mxu0 0.0
        %543 = vmatmul.mubr.f32.gmra.mrb[0].mxu0 %v397
        %v544 = vpop.f32.mrb[0].mxu0
        %v545 = vadd.f32 0.0, %v544
        %v546 = vpop.f32.mrb[0].mxu0
        %547 = vmatprep.mubr.f32.mxu0 0.0
        %548 = vmatmul.mubr.f32.gmra.mrb[0].mxu0 %v400
        %v549 = vpop.f32.mrb[0].mxu0
        %v550 = vadd.f32 0.0, %v549
        %v551 = vpop.f32.mrb[0].mxu0
        %552 = vmatprep.mubr.f32.mxu0 0.0
        %553 = vmatmul.mubr.f32.gmra.mrb[0].mxu0 %v403
        %v554 = vpop.f32.mrb[0].mxu0
        %v555 = vadd.f32 0.0, %v554
        %v556 = vpop.f32.mrb[0].mxu0
        %557 = vmatprep.mubr.f32.mxu0 0.0
        %558 = vmatmul.mubr.f32.gmra.mrb[0].mxu0 %v406
        %v559 = vpop.f32.mrb[0].mxu0
        %v560 = vadd.f32 0.0, %v559
        %v561 = vpop.f32.mrb[0].mxu0
        %562 = vmatprep.mubr.f32.mxu0 0.0
        %563 = vmatmul.mubr.f32.gmra.mrb[0].mxu0 %v409
        %v564 = vpop.f32.mrb[0].mxu0
        %v565 = vadd.f32 0.0, %v564
        %v566 = vpop.f32.mrb[0].mxu0
        %567 = vmatprep.mubr.f32.mxu0 0.0
        %568 = vmatmul.mubr.f32.gmra.mrb[0].mxu0 %v412
        %v569 = vpop.f32.mrb[0].mxu0
        %v570 = vadd.f32 0.0, %v569
        %v571 = vpop.f32.mrb[0].mxu0
        %572 = vmatprep.mubr.f32.mxu0 0.0
        %573 = vmatmul.mubr.f32.gmra.mrb[0].mxu0 %v415
        %v574 = vpop.f32.mrb[0].mxu0
        %v575 = vadd.f32 0.0, %v574
        %v576 = vpop.f32.mrb[0].mxu0
        %577 = vmatprep.mubr.f32.mxu0 0.0
        %578 = vmatmul.mubr.f32.gmra.mrb[0].mxu0 %v418
        %v579 = vpop.f32.mrb[0].mxu0
        %v580 = vadd.f32 0.0, %v579
        %v581 = vpop.f32.mrb[0].mxu0
        %582 = vmatprep.mubr.f32.mxu0 0.0
        %583 = vmatmul.mubr.f32.gmra.mrb[0].mxu0 %v421
        %v584 = vpop.f32.mrb[0].mxu0
        %v585 = vadd.f32 0.0, %v584
        %v586 = vpop.f32.mrb[0].mxu0
        %587 = vmatprep.mubr.f32.mxu0 0.0
        %588 = vmatmul.mubr.f32.gmra.mrb[0].mxu0 %v424
        %v589 = vpop.f32.mrb[0].mxu0
        %v590 = vadd.f32 0.0, %v589
        %v591 = vpop.f32.mrb[0].mxu0
        %592 = vmatprep.mubr.f32.mxu0 0.0
        %593 = vmatmul.mubr.f32.gmra.mrb[0].mxu0 %v427
        %v594 = vpop.f32.mrb[0].mxu0
        %v595 = vadd.f32 0.0, %v594
        %v596 = vpop.f32.mrb[0].mxu0
        %597 = vmatprep.mubr.f32.mxu0 0.0
        %598 = vmatmul.mubr.f32.gmra.mrb[0].mxu0 %v430
        %v599 = vpop.f32.mrb[0].mxu0
        %v600 = vadd.f32 0.0, %v599
        %v601 = vpop.f32.mrb[0].mxu0
        %602 = vmatprep.mubr.f32.mxu0 0.0
        %603 = vmatmul.mubr.f32.gmra.mrb[0].mxu0 %v433
        %v604 = vpop.f32.mrb[0].mxu0
        %v605 = vadd.f32 0.0, %v604
        %v606 = vpop.f32.mrb[0].mxu0
        %607 = vmatprep.mubr.f32.mxu0 0.0
        %608 = vmatmul.mubr.f32.gmra.mrb[0].mxu0 %v436
        %v609 = vpop.f32.mrb[0].mxu0
        %v610 = vadd.f32 0.0, %v609
        %v611 = vpop.f32.mrb[0].mxu0
        %612 = vmatprep.mubr.f32.mxu0 0.0
        %613 = vmatmul.mubr.f32.gmra.mrb[0].mxu0 %v439
        %v614 = vpop.f32.mrb[0].mxu0
        %v615 = vadd.f32 0.0, %v614
        %v616 = vpop.f32.mrb[0].mxu0
        %617 = vmatprep.mubr.f32.mxu0 0.0
        %618 = vmatmul.mubr.f32.gmra.mrb[0].mxu0 %v442
        %v619 = vpop.f32.mrb[0].mxu0
        %v620 = vadd.f32 0.0, %v619
        %v621 = vpop.f32.mrb[0].mxu0
        %622 = vmatprep.mubr.f32.mxu0 0.0
        %623 = vmatmul.mubr.f32.gmra.mrb[0].mxu0 %v445
        %v624 = vpop.f32.mrb[0].mxu0
        %v625 = vadd.f32 0.0, %v624
        %v626 = vpop.f32.mrb[0].mxu0
        %627 = vmatprep.mubr.f32.mxu0 0.0
        %628 = vmatmul.mubr.f32.gmra.mrb[0].mxu0 %v448
        %v629 = vpop.f32.mrb[0].mxu0
        %v630 = vadd.f32 0.0, %v629
        %v631 = vpop.f32.mrb[0].mxu0
        %632 = vmatprep.mubr.f32.mxu0 0.0
        %633 = vmatmul.mubr.f32.gmra.mrb[0].mxu0 %v451
        %v634 = vpop.f32.mrb[0].mxu0
        %v635 = vadd.f32 0.0, %v634
        %v636 = vpop.f32.mrb[0].mxu0
        %637 = vdwg.mxu0
        %v638 = vlaneseq
        %v639 = vand.u32 %v638, 127
        %vm640 = vcmp.lt.s32.totalorder %v639, 0
        %v641 = vsub.s32 0, %v639
        %v642 = vsel %vm640, %v641, %v639
        %v643 = vshrl.u32 %v642, 4
        %v644 = vand.u32 %v642, 15
        %v645 = vsub.s32 0, %v644
        %v646 = vsel %vm640, %v645, %v644
        %vm647 = vcmp.ne.s32.totalorder %v646, 0
        %vm648 = vcmp.lt.s32.totalorder %v646, 0
        %vm649 = vmand %vm648, %vm647
        %v650 = vadd.s32 %v646, 16
        %v651 = vsel %vm649, %v650, %v646
        %652 = vrot.lane.b32.xlu0 %v520, 1
        %v653 = vpop.permute.xlu0 %652
        %654 = vrot.lane.b32.xlu0 %v525, 1
        %v655 = vpop.permute.xlu0 %654
        %656 = vrot.lane.b32.xlu0 %v530, 1
        %v657 = vpop.permute.xlu0 %656
        %658 = vrot.lane.b32.xlu0 %v535, 1
        %v659 = vpop.permute.xlu0 %658
        %660 = vrot.lane.b32.xlu0 %v540, 1
        %v661 = vpop.permute.xlu0 %660
        %662 = vrot.lane.b32.xlu0 %v545, 1
        %v663 = vpop.permute.xlu0 %662
        %664 = vrot.lane.b32.xlu0 %v550, 1
        %v665 = vpop.permute.xlu0 %664
        %666 = vrot.lane.b32.xlu0 %v555, 1
        %v667 = vpop.permute.xlu0 %666
        %668 = vrot.lane.b32.xlu0 %v600, 127
        %v669 = vpop.permute.xlu0 %668
        %670 = vrot.lane.b32.xlu0 %v605, 127
        %v671 = vpop.permute.xlu0 %670
        %672 = vrot.lane.b32.xlu0 %v610, 127
        %v673 = vpop.permute.xlu0 %672
        %674 = vrot.lane.b32.xlu0 %v615, 127
        %v675 = vpop.permute.xlu0 %674
        %676 = vrot.lane.b32.xlu0 %v620, 127
        %v677 = vpop.permute.xlu0 %676
        %678 = vrot.lane.b32.xlu0 %v625, 127
        %v679 = vpop.permute.xlu0 %678
        %680 = vrot.lane.b32.xlu0 %v630, 127
        %v681 = vpop.permute.xlu0 %680
        %682 = vrot.lane.b32.xlu0 %v635, 127
        %v683 = vpop.permute.xlu0 %682
        %vm684 = vcmp.ne.s32.totalorder %v651, 0
        %v685 = vsel %vm684, %v653, 0.0
        %v686 = vsel %vm684, %v655, 0.0
        %v687 = vsel %vm684, %v657, 0.0
        %v688 = vsel %vm684, %v659, 0.0
        %v689 = vsel %vm684, %v661, 0.0
        %v690 = vsel %vm684, %v663, 0.0
        %v691 = vsel %vm684, %v665, 0.0
        %v692 = vsel %vm684, %v667, 0.0
        %v693 = vadd.f32 %v685, %v560
        %v694 = vadd.f32 %v686, %v565
        %v695 = vadd.f32 %v687, %v570
        %v696 = vadd.f32 %v688, %v575
        %v697 = vadd.f32 %v689, %v580
        %v698 = vadd.f32 %v690, %v585
        %v699 = vadd.f32 %v691, %v590
        %v700 = vadd.f32 %v692, %v595
        %vm701 = vcmp.ne.s32.totalorder %v651, 15
        %v702 = vsel %vm701, %v669, 0.0
        %v703 = vsel %vm701, %v671, 0.0
        %v704 = vsel %vm701, %v673, 0.0
        %v705 = vsel %vm701, %v675, 0.0
        %v706 = vsel %vm701, %v677, 0.0
        %v707 = vsel %vm701, %v679, 0.0
        %v708 = vsel %vm701, %v681, 0.0
        %v709 = vsel %vm701, %v683, 0.0
        %v710 = vadd.f32 %v693, %v702
        %v711 = vadd.f32 %v694, %v703
        %v712 = vadd.f32 %v695, %v704
        %v713 = vadd.f32 %v696, %v705
        %v714 = vadd.f32 %v697, %v706
        %v715 = vadd.f32 %v698, %v707
        %v716 = vadd.f32 %v699, %v708
        %v717 = vadd.f32 %v700, %v709
        %v718 = vmax.f32 %v710, 0.0
        %v719 = vmax.f32 %v711, 0.0
        %v720 = vmax.f32 %v712, 0.0
        %v721 = vmax.f32 %v713, 0.0
        %v722 = vmax.f32 %v714, 0.0
        %v723 = vmax.f32 %v715, 0.0
        %v724 = vmax.f32 %v716, 0.0
        %v725 = vmax.f32 %v717, 0.0
        %v726 = vld [vmem:[%s3] sm:$0xff]
        %v727 = vld [vmem:[%s3 + $0x8] sm:$0xff]
        %v728 = vld [vmem:[%s3 + $0x10] sm:$0xff]
        %v729 = vld [vmem:[%s3 + $0x18] sm:$0xff]
        %v730 = vld [vmem:[%s3 + $0x20] sm:$0xff]
        %v731 = vld [vmem:[%s3 + $0x28] sm:$0xff]
        %v732 = vld [vmem:[%s3 + $0x30] sm:$0xff]
        %v733 = vld [vmem:[%s3 + $0x38] sm:$0xff]
        %735 = vset.pattern.permute.xlu0 0
        %736 = vperm.xlu0 %735, %v726
        %v737 = vpop.permute.xlu0 %736
        %740 = vset.pattern.permute.xlu0 0
        %741 = vperm.xlu0 %740, %v727
        %v742 = vpop.permute.xlu0 %741
        %745 = vset.pattern.permute.xlu0 0
        %746 = vperm.xlu0 %745, %v728
        %v747 = vpop.permute.xlu0 %746
        %750 = vset.pattern.permute.xlu0 0
        %751 = vperm.xlu0 %750, %v729
        %v752 = vpop.permute.xlu0 %751
        %755 = vset.pattern.permute.xlu0 0
        %756 = vperm.xlu0 %755, %v730
        %v757 = vpop.permute.xlu0 %756
        %760 = vset.pattern.permute.xlu0 0
        %761 = vperm.xlu0 %760, %v731
        %v762 = vpop.permute.xlu0 %761
        %765 = vset.pattern.permute.xlu0 0
        %766 = vperm.xlu0 %765, %v732
        %v767 = vpop.permute.xlu0 %766
        %770 = vset.pattern.permute.xlu0 0
        %771 = vperm.xlu0 %770, %v733
        %v772 = vpop.permute.xlu0 %771
        %v774 = vmul.f32 %v718, %v737
        %v775 = vmul.f32 %v719, %v742
        %v776 = vmul.f32 %v720, %v747
        %v777 = vmul.f32 %v721, %v752
        %v778 = vmul.f32 %v722, %v757
        %v779 = vmul.f32 %v723, %v762
        %v780 = vmul.f32 %v724, %v767
        %v781 = vmul.f32 %v725, %v772
        %v782 = vadd.f32 %v774, %v775
        %v783 = vadd.f32 %v782, %v776
        %v784 = vadd.f32 %v783, %v777
        %v785 = vadd.f32 %v784, %v778
        %v786 = vadd.f32 %v785, %v779
        %v787 = vadd.f32 %v786, %v780
        %v788 = vadd.f32 %v787, %v781
        %v789 = vrot.slane %v788, 4
        %v790 = vadd.f32 %v788, %v789
        %v791 = vrot.slane %v790, 2
        %v792 = vadd.f32 %v790, %v791
        %v793 = vrot.slane %v792, 1
        %v794 = vadd.f32 %v792, %v793
        %795 = vst [vmem:[%s189] sm:$0x1] %v794
        %s796 = sand.u32 %s115, 1
        %s797 = scalar_lea.sflag [#allocation3], %s796
        %s798 = sand.u32 %s115, 1
        %s799 = scalar_lea.vmem [#allocation2], %s798
        // Predicated region
        $region37: #{tpu_custom_call.1} parent=35 // pred_check
          %p800 = pneg %p125
        $region38: #{tpu_custom_call.1} parent=35 // pred_check_branch
          %802 = sbr.rel (%p800) target = $region40
        $region39: #{tpu_custom_call.1} parent=35 // pred_region
          %s804 = ssub.s32 16, 16
          %805 = vsyncadd %s797, %s804
          %s806 = smul.addr %s18, 16
          %s807 = scalar_lea.hbm %s4, %s806
          %s809 = sshll.u32 %s799, 4
          %s810 = int_to_ptr.vmem [resolvable:$true] %s809
          %812 = dma.vmem_to_hbm [thread:$0]  %s810, 16, %s807, %s797
        $region40: #{tpu_custom_call.1} parent=35 // pred_fallthru
          _
      $region36: #{tpu_custom_call.1} parent=5 // pred_fallthru
        _
      %p813 = scmp.le.s32.totalorder 2, %s13
      // Predicated region
      $region41: #{tpu_custom_call.1} parent=5 // pred_check
        %p814 = pneg %p813
      $region42: #{tpu_custom_call.1} parent=5 // pred_check_branch
        %816 = sbr.rel (%p814) target = $region44
      $region43: #{tpu_custom_call.1} parent=5 // pred_region
        %s817 = ssub.s32 %s13, 2
        // Predicated region
        $region45: #{tpu_custom_call.1} parent=43 // pred_check
          %p818 = pneg %p131
        $region46: #{tpu_custom_call.1} parent=43 // pred_check_branch
          %820 = sbr.rel (%p818) target = $region48
        $region47: #{tpu_custom_call.1} parent=43 // pred_region
          %s821 = sand.u32 %s116, 1
          %s822 = scalar_lea.sflag [#allocation3], %s821
          %s823 = sand.u32 %s116, 1
          %s824 = scalar_lea.vmem [#allocation2], %s823
          %825 = dma.done %s822, 16
        $region48: #{tpu_custom_call.1} parent=43 // pred_fallthru
          _
      $region44: #{tpu_custom_call.1} parent=5 // pred_fallthru
        _
    $region6: #{tpu_custom_call.1} parent=1 // loop_footer
      %s17 = sadd.s32 1, %s13
    $region7: #{tpu_custom_call.1} parent=1 // loop_footer_branch
      %12 = sbr.rel target = $region3
    $region8: #{tpu_custom_call.1} parent=1 // loop_exit
      _
    %826 = vsyncpa [#allocation3], 1
    %s827 = scalar_lea.sflag [#allocation3], 1
    %828 = vsyncpa %s827, 1

</llo_original>
